<compile_context>
chip_gen: v7x
topology: tpu7x:2x2x1
jax: 0.10.0
libtpu: 0.0.40
codegen_flags: <defaults>
</compile_context>

<pallas_src>
import functools

import numpy as np
import jax
import jax.numpy as jnp
from jax.experimental import pallas as pl
from jax.experimental.pallas import tpu as pltpu


def _round_up(x, m):
    return ((x + m - 1) // m) * m


# ----------------------------------------------------------------------------
# Pallas kernel: one grid step handles TILE anchor rows.
# ----------------------------------------------------------------------------
def _margin_loss_kernel(batch_ref, pidx_ref, nidx_ref, lbl_ref, beta_ref, out_ref,
                        *, margin, bs, tile, bs_pad, c_pad):
    i = pl.program_id(0)
    row0 = pl.multiple_of(i * tile, tile)

    allb = batch_ref[...]                                        # (bs_pad, dim), resident
    a = batch_ref[pl.ds(row0, tile), :].astype(jnp.float32)      # (tile, dim) anchors

    p_col = pidx_ref[0]                                          # (tile, 1) int32
    n_col = nidx_ref[0]                                          # (tile, 1) int32
    l_col = lbl_ref[0]                                           # (tile, 1) int32

    # On-chip gather of positive / negative rows via one-hot matmul (MXU).
    cols = jax.lax.broadcasted_iota(jnp.int32, (tile, bs_pad), 1)
    oh_p = (cols == p_col).astype(allb.dtype)                    # (tile, bs_pad)
    oh_n = (cols == n_col).astype(allb.dtype)
    pos = jnp.dot(oh_p, allb, preferred_element_type=jnp.float32)  # (tile, dim)
    neg = jnp.dot(oh_n, allb, preferred_element_type=jnp.float32)

    # d_ap = sqrt(sum((a-p)^2) + 1e-8), d_an = sqrt(sum((a-n)^2) + 1e-8)
    d_ap = jnp.sqrt(jnp.sum((a - pos) ** 2, axis=1, keepdims=True) + 1e-8)  # (tile, 1)
    d_an = jnp.sqrt(jnp.sum((a - neg) ** 2, axis=1, keepdims=True) + 1e-8)

    # Per-anchor beta gathered on-chip from the small per-class table.
    ccols = jax.lax.broadcasted_iota(jnp.int32, (tile, c_pad), 1)
    beta_row = beta_ref[...]                                     # (1, c_pad) f32
    beta_t = jnp.sum(jnp.where(ccols == l_col, beta_row, 0.0),
                     axis=1, keepdims=True)                      # (tile, 1)

    pos_loss = jnp.maximum(d_ap - beta_t + margin, 0.0)
    neg_loss = jnp.maximum(beta_t - d_an + margin, 0.0)

    loss_col = pos_loss + neg_loss                               # (tile, 1)
    cnt_col = (pos_loss > 0.0).astype(jnp.float32) + (neg_loss > 0.0).astype(jnp.float32)

    if bs != bs_pad:  # mask padded rows (static specialization)
        gidx = jax.lax.broadcasted_iota(jnp.int32, (tile, 1), 0) + row0
        valid = (gidx < bs).astype(jnp.float32)
        loss_col = loss_col * valid
        cnt_col = cnt_col * valid

    # Pack [total, count, 0, ...] into one lane-dense (1,128) row per block.
    lane = jax.lax.broadcasted_iota(jnp.int32, (tile, 128), 1)
    packed = jnp.where(lane == 0, loss_col, jnp.where(lane == 1, cnt_col, 0.0))
    out_ref[0] = jnp.sum(packed, axis=0, keepdims=True)          # (1, 128)


# ----------------------------------------------------------------------------
# Wrapper: tiling, padding, VMEM budgeting, final scalar reduce in plain JAX.
# ----------------------------------------------------------------------------
def margin_loss_pallas(batch, p_idx, n_idx, anchor_labels, beta_table,
                       *, margin=0.2, tile_bs=512):
    """batch: (BS, DIM) f32/bf16 jax array (rows are the anchors, in order);
    p_idx/n_idx/anchor_labels: host int arrays of shape (BS,);
    beta_table: (n_classes,) per-class beta values.  Returns scalar f32 loss."""
    bs, dim = batch.shape

    tile = _round_up(min(int(tile_bs), _round_up(bs, 8)), 8)
    bs_pad = _round_up(bs, tile)
    num_tiles = bs_pad // tile

    if bs_pad != bs:
        batch = jnp.pad(batch, ((0, bs_pad - bs), (0, 0)))

    def _prep_idx(v):
        v = np.asarray(v, dtype=np.int32).reshape(-1)
        if bs_pad != bs:
            v = np.pad(v, (0, bs_pad - bs))
        return jnp.asarray(v.reshape(num_tiles, tile, 1))

    p3 = _prep_idx(p_idx)
    n3 = _prep_idx(n_idx)
    l3 = _prep_idx(anchor_labels)

    beta_np = np.asarray(beta_table, dtype=np.float32).reshape(-1)
    c = beta_np.shape[0]
    c_pad = _round_up(c, 128)
    beta2d = jnp.asarray(np.pad(beta_np, (0, c_pad - c)).reshape(1, c_pad))

    # VMEM budget: resident batch (double-buffered alloc) + tiny idx/out tiles
    # + headroom for the (tile, dim)/(tile, bs_pad) working intermediates.
    itemsize = jnp.dtype(batch.dtype).itemsize
    vmem_need = (2 * bs_pad * dim * itemsize
                 + 3 * 2 * tile * 4
                 + 2 * c_pad * 4
                 + 2 * 128 * 4
                 + 6 * tile * max(dim, bs_pad, 128) * 4)
    vmem_limit = int(min(max(vmem_need + (4 << 20), 16 << 20), 100 << 20))

    kernel = functools.partial(_margin_loss_kernel, margin=float(margin),
                               bs=bs, tile=tile, bs_pad=bs_pad, c_pad=c_pad)

    partials = pl.pallas_call(
        kernel,
        out_shape=jax.ShapeDtypeStruct((num_tiles, 1, 128), jnp.float32),
        grid=(num_tiles,),
        in_specs=[
            pl.BlockSpec((bs_pad, dim), lambda i: (0, 0)),     # batch, VMEM-resident
            pl.BlockSpec((1, tile, 1), lambda i: (i, 0, 0)),   # positive indices
            pl.BlockSpec((1, tile, 1), lambda i: (i, 0, 0)),   # negative indices
            pl.BlockSpec((1, tile, 1), lambda i: (i, 0, 0)),   # anchor labels
            pl.BlockSpec((1, c_pad), lambda i: (0, 0)),        # per-class beta, resident
        ],
        out_specs=pl.BlockSpec((1, 1, 128), lambda i: (i, 0, 0)),
        compiler_params=pltpu.CompilerParams(
            dimension_semantics=("parallel",),
            vmem_limit_bytes=vmem_limit,
        ),
    )(batch, p3, n3, l3, beta2d)

    total = jnp.sum(partials[:, 0, 0])
    count = jnp.sum(partials[:, 0, 1])
    return jnp.where(count > 0.0, total / jnp.maximum(count, 1.0), total)


# ----------------------------------------------------------------------------
# Host-side glue: deterministic distance-weighted triplet sampler (numpy),
# mirroring Sampler('distance').distanceweightedsampling.
# TODO(synk): the data-dependent stochastic sampling stays on host (numpy RNG,
#             as in the original); it has no clean Pallas equivalent.
# ----------------------------------------------------------------------------
def _pdist_np(A, eps=1e-4):
    prod = A @ A.T
    norm = np.diag(prod)[:, None]
    res = np.clip(norm + norm.T - 2.0 * prod, 0.0, None)
    return np.sqrt(np.clip(res, eps, None))


def distance_weighted_sampling(batch, labels, rng, lower_cutoff=0.5):
    bs, dim = batch.shape
    dist = np.clip(_pdist_np(batch), lower_cutoff, None)
    triplets = []
    for i in range(bs):
        pos = labels == labels[i]
        d = dist[i]
        log_q = (2.0 - float(dim)) * np.log(d) - (float(dim) - 3.0) / 2.0 * np.log(
            np.clip(1.0 - 0.25 * d ** 2, 1e-12, None))
        log_q = log_q.copy()
        log_q[pos] = 0.0
        q = np.exp(log_q - np.max(log_q))
        q[pos] = 0.0
        q = q / q.sum()
        pos_idx = pos.copy()
        pos_idx[i] = False
        p = int(rng.choice(np.where(pos_idx)[0]))
        n = int(rng.choice(bs, p=q))
        triplets.append((i, p, n))
    return triplets


class MarginLossPallas:
    def __init__(self, margin=0.2, nu=0, beta=1.2, n_classes=100, beta_constant=False):
        self.margin = margin
        self.nu = nu                      # accepted but unused (matches reference forward)
        self.n_classes = n_classes
        self.beta_constant = beta_constant
        self.beta_val = beta
        # deterministic "parameter" init: ones(n_classes) * beta  (forward only)
        self.beta = jnp.ones((n_classes,), dtype=jnp.float32) * beta

    def __call__(self, batch, labels, rng):
        batch_np = np.asarray(batch, dtype=np.float32)
        labels_np = np.asarray(labels)
        triplets = distance_weighted_sampling(batch_np, labels_np, rng)

        a_idx = np.array([t[0] for t in triplets], dtype=np.int32)
        # Distance sampler anchors are exactly range(BS): no anchor gather needed.
        assert np.array_equal(a_idx, np.arange(batch_np.shape[0], dtype=np.int32))

        p_idx = np.array([t[1] for t in triplets], dtype=np.int32)
        n_idx = np.array([t[2] for t in triplets], dtype=np.int32)
        anchor_labels = labels_np[a_idx].astype(np.int32)

        if self.beta_constant:
            beta_table = np.full((self.n_classes,), self.beta_val, dtype=np.float32)
        else:
            beta_table = self.beta

        return margin_loss_pallas(batch, p_idx, n_idx, anchor_labels, beta_table,
                                  margin=self.margin)


if __name__ == "__main__":
    # DIM >= 128 keeps the lane axis dense (embedding dim maps to vreg lanes).
    BS, DIM, N_CLASSES = 8, 128, 10

    key = jax.random.PRNGKey(0)
    batch = jax.random.normal(key, (BS, DIM), dtype=jnp.float32)
    # L2-normalize embeddings (standard for metric learning / this loss)
    batch = batch / jnp.linalg.norm(batch, axis=1, keepdims=True)

    labels = np.array([0, 0, 1, 1, 2, 2, 3, 3], dtype=np.int64)
    rng = np.random.default_rng(0)

    loss_mod = MarginLossPallas(margin=0.2, beta=1.2, n_classes=N_CLASSES)
    loss = loss_mod(batch, labels, rng)
    loss = jax.block_until_ready(loss)

    assert np.isfinite(float(loss))
    print("KERNEL_OK")
</pallas_src>

<mosaic_0001>
module attributes {stable_mosaic.version = 11 : i64} {
  func.func @_margin_loss_kernel(%arg0: i32, %arg1: memref<8x128xf32, #tpu.memory_space<vmem>>, %arg2: memref<1x8x1xi32, #tpu.memory_space<vmem>>, %arg3: memref<1x8x1xi32, #tpu.memory_space<vmem>>, %arg4: memref<1x8x1xi32, #tpu.memory_space<vmem>>, %arg5: memref<1x128xf32, #tpu.memory_space<vmem>>, %arg6: memref<1x1x128xf32, #tpu.memory_space<vmem>>) attributes {dimension_semantics = [#tpu.dimension_semantics<parallel>], iteration_bounds = array<i64: 1>, scalar_prefetch = 0 : i64, scratch_operands = 0 : i64, tpu.core_type = #tpu.core_type<tc>, window_params = [{pipeline_mode = #tpu.pipeline_mode<synchronous>, transform_indices = @transform_0, window_bounds = array<i64: 8, 128>}, {transform_indices = @transform_1, window_bounds = array<i64: 1, 8, 1>}, {transform_indices = @transform_2, window_bounds = array<i64: 1, 8, 1>}, {transform_indices = @transform_3, window_bounds = array<i64: 1, 8, 1>}, {pipeline_mode = #tpu.pipeline_mode<synchronous>, transform_indices = @transform_4, window_bounds = array<i64: 1, 128>}, {transform_indices = @transform_5, window_bounds = array<i64: 1, 1, 128>}]} {
    %c8_i32 = arith.constant 8 : i32
    %0 = arith.muli %arg0, %c8_i32 : i32
    %1 = tpu.assume_multiple %0, 8 : i32
    %c0 = arith.constant 0 : index
    %c0_0 = arith.constant 0 : index
    %2 = vector.load %arg1[%c0, %c0_0] : memref<8x128xf32, #tpu.memory_space<vmem>>, vector<8x128xf32>
    %3 = arith.index_cast %1 : i32 to index
    %c0_1 = arith.constant 0 : index
    %4 = vector.load %arg1[%3, %c0_1] : memref<8x128xf32, #tpu.memory_space<vmem>>, vector<8x128xf32>
    %c0_2 = arith.constant 0 : index
    %c0_3 = arith.constant 0 : index
    %c0_4 = arith.constant 0 : index
    %5 = vector.load %arg2[%c0_2, %c0_3, %c0_4] : memref<1x8x1xi32, #tpu.memory_space<vmem>>, vector<1x8x1xi32>
    %6 = vector.shape_cast %5 : vector<1x8x1xi32> to vector<8x1xi32>
    %c0_5 = arith.constant 0 : index
    %c0_6 = arith.constant 0 : index
    %c0_7 = arith.constant 0 : index
    %7 = vector.load %arg3[%c0_5, %c0_6, %c0_7] : memref<1x8x1xi32, #tpu.memory_space<vmem>>, vector<1x8x1xi32>
    %8 = vector.shape_cast %7 : vector<1x8x1xi32> to vector<8x1xi32>
    %c0_8 = arith.constant 0 : index
    %c0_9 = arith.constant 0 : index
    %c0_10 = arith.constant 0 : index
    %9 = vector.load %arg4[%c0_8, %c0_9, %c0_10] : memref<1x8x1xi32, #tpu.memory_space<vmem>>, vector<1x8x1xi32>
    %10 = vector.shape_cast %9 : vector<1x8x1xi32> to vector<8x1xi32>
    %11 = tpu.iota {dimensions = array<i32: 1>} : vector<8x8xi32>
    %12 = vector.broadcast %6 : vector<8x1xi32> to vector<8x8xi32>
    %13 = arith.cmpi eq, %11, %12 : vector<8x8xi32>
    %14 = arith.extui %13 : vector<8x8xi1> to vector<8x8xi32>
    %15 = arith.sitofp %14 : vector<8x8xi32> to vector<8x8xf32>
    %16 = vector.broadcast %8 : vector<8x1xi32> to vector<8x8xi32>
    %17 = arith.cmpi eq, %11, %16 : vector<8x8xi32>
    %18 = arith.extui %17 : vector<8x8xi1> to vector<8x8xi32>
    %19 = arith.sitofp %18 : vector<8x8xi32> to vector<8x8xf32>
    %cst = arith.constant dense<0.000000e+00> : vector<8x128xf32>
    %20 = tpu.matmul %15, %2, %cst {dimension_numbers = #tpu.dot_dimension_numbers<[1], [0], [0], [1], [0, 0, 1, 1], [], []>} : vector<8x8xf32>, vector<8x128xf32>, vector<8x128xf32> -> vector<8x128xf32>
    %cst_11 = arith.constant dense<0.000000e+00> : vector<8x128xf32>
    %21 = tpu.matmul %19, %2, %cst_11 {dimension_numbers = #tpu.dot_dimension_numbers<[1], [0], [0], [1], [0, 0, 1, 1], [], []>} : vector<8x8xf32>, vector<8x128xf32>, vector<8x128xf32> -> vector<8x128xf32>
    %22 = arith.subf %4, %20 : vector<8x128xf32>
    %23 = arith.mulf %22, %22 : vector<8x128xf32>
    %cst_12 = arith.constant dense<0.000000e+00> : vector<8xf32>
    %24 = vector.multi_reduction <add>, %23, %cst_12 [1] : vector<8x128xf32> to vector<8xf32>
    %25 = vector.shape_cast %24 : vector<8xf32> to vector<8x1xf32>
    %cst_13 = arith.constant 9.99999993E-9 : f32
    %26 = vector.broadcast %cst_13 : f32 to vector<8x1xf32>
    %27 = arith.addf %25, %26 : vector<8x1xf32>
    %28 = math.sqrt %27 : vector<8x1xf32>
    %29 = arith.subf %4, %21 : vector<8x128xf32>
    %30 = arith.mulf %29, %29 : vector<8x128xf32>
    %cst_14 = arith.constant dense<0.000000e+00> : vector<8xf32>
    %31 = vector.multi_reduction <add>, %30, %cst_14 [1] : vector<8x128xf32> to vector<8xf32>
    %32 = vector.shape_cast %31 : vector<8xf32> to vector<8x1xf32>
    %cst_15 = arith.constant 9.99999993E-9 : f32
    %33 = vector.broadcast %cst_15 : f32 to vector<8x1xf32>
    %34 = arith.addf %32, %33 : vector<8x1xf32>
    %35 = math.sqrt %34 : vector<8x1xf32>
    %36 = tpu.iota {dimensions = array<i32: 1>} : vector<8x128xi32>
    %c0_16 = arith.constant 0 : index
    %c0_17 = arith.constant 0 : index
    %37 = vector.load %arg5[%c0_16, %c0_17] : memref<1x128xf32, #tpu.memory_space<vmem>>, vector<1x128xf32>
    %38 = vector.broadcast %10 : vector<8x1xi32> to vector<8x128xi32>
    %39 = arith.cmpi eq, %36, %38 : vector<8x128xi32>
    %cst_18 = arith.constant 0.000000e+00 : f32
    %40 = vector.shape_cast %37 : vector<1x128xf32> to vector<1x128xf32>
    %41 = vector.broadcast %40 : vector<1x128xf32> to vector<8x128xf32>
    %42 = vector.broadcast %cst_18 : f32 to vector<8x128xf32>
    %43 = arith.select %39, %41, %42 : vector<8x128xi1>, vector<8x128xf32>
    %cst_19 = arith.constant dense<0.000000e+00> : vector<8xf32>
    %44 = vector.multi_reduction <add>, %43, %cst_19 [1] : vector<8x128xf32> to vector<8xf32>
    %45 = vector.shape_cast %44 : vector<8xf32> to vector<8x1xf32>
    %46 = arith.subf %28, %45 : vector<8x1xf32>
    %cst_20 = arith.constant 2.000000e-01 : f32
    %47 = vector.broadcast %cst_20 : f32 to vector<8x1xf32>
    %48 = arith.addf %46, %47 : vector<8x1xf32>
    %cst_21 = arith.constant 0.000000e+00 : f32
    %49 = vector.broadcast %cst_21 : f32 to vector<8x1xf32>
    %50 = arith.maximumf %48, %49 : vector<8x1xf32>
    %51 = arith.subf %45, %35 : vector<8x1xf32>
    %cst_22 = arith.constant 2.000000e-01 : f32
    %52 = vector.broadcast %cst_22 : f32 to vector<8x1xf32>
    %53 = arith.addf %51, %52 : vector<8x1xf32>
    %cst_23 = arith.constant 0.000000e+00 : f32
    %54 = vector.broadcast %cst_23 : f32 to vector<8x1xf32>
    %55 = arith.maximumf %53, %54 : vector<8x1xf32>
    %56 = arith.addf %50, %55 : vector<8x1xf32>
    %cst_24 = arith.constant 0.000000e+00 : f32
    %57 = vector.broadcast %cst_24 : f32 to vector<8x1xf32>
    %58 = arith.cmpf ogt, %50, %57 : vector<8x1xf32>
    %59 = arith.extui %58 : vector<8x1xi1> to vector<8x1xi32>
    %60 = arith.sitofp %59 : vector<8x1xi32> to vector<8x1xf32>
    %cst_25 = arith.constant 0.000000e+00 : f32
    %61 = vector.broadcast %cst_25 : f32 to vector<8x1xf32>
    %62 = arith.cmpf ogt, %55, %61 : vector<8x1xf32>
    %63 = arith.extui %62 : vector<8x1xi1> to vector<8x1xi32>
    %64 = arith.sitofp %63 : vector<8x1xi32> to vector<8x1xf32>
    %65 = arith.addf %60, %64 : vector<8x1xf32>
    %66 = tpu.iota {dimensions = array<i32: 1>} : vector<8x128xi32>
    %c0_i32 = arith.constant 0 : i32
    %67 = vector.broadcast %c0_i32 : i32 to vector<8x128xi32>
    %68 = arith.cmpi eq, %66, %67 : vector<8x128xi32>
    %c1_i32 = arith.constant 1 : i32
    %69 = vector.broadcast %c1_i32 : i32 to vector<8x128xi32>
    %70 = arith.cmpi eq, %66, %69 : vector<8x128xi32>
    %cst_26 = arith.constant 0.000000e+00 : f32
    %71 = vector.shape_cast %65 : vector<8x1xf32> to vector<8x1xf32>
    %72 = vector.broadcast %71 : vector<8x1xf32> to vector<8x128xf32>
    %73 = vector.broadcast %cst_26 : f32 to vector<8x128xf32>
    %74 = arith.select %70, %72, %73 : vector<8x128xi1>, vector<8x128xf32>
    %75 = vector.shape_cast %56 : vector<8x1xf32> to vector<8x1xf32>
    %76 = vector.broadcast %75 : vector<8x1xf32> to vector<8x128xf32>
    %77 = arith.select %68, %76, %74 : vector<8x128xi1>, vector<8x128xf32>
    %cst_27 = arith.constant dense<0.000000e+00> : vector<128xf32>
    %78 = vector.multi_reduction <add>, %77, %cst_27 [0] : vector<8x128xf32> to vector<128xf32>
    %79 = vector.shape_cast %78 : vector<128xf32> to vector<1x128xf32>
    %c0_28 = arith.constant 0 : index
    %c0_29 = arith.constant 0 : index
    %c0_30 = arith.constant 0 : index
    %80 = vector.load %arg6[%c0_28, %c0_29, %c0_30] : memref<1x1x128xf32, #tpu.memory_space<vmem>>, vector<1x1x128xf32>
    %81 = vector.shape_cast %80 : vector<1x1x128xf32> to vector<1x128xf32>
    %82 = vector.shape_cast %79 : vector<1x128xf32> to vector<1x1x128xf32>
    tpu.vector_store %arg6[%c0_28, %c0_29, %c0_30], %82 {strides = array<i32>} : memref<1x1x128xf32, #tpu.memory_space<vmem>>, vector<1x1x128xf32>,
    return
  }
  func.func @transform_0(%arg0: i32) -> (i32, i32) {
    %c0_i32 = arith.constant 0 : i32
    %c0_i32_0 = arith.constant 0 : i32
    %c0_i32_1 = arith.constant 0 : i32
    return %c0_i32, %c0_i32_0 : i32, i32
  }
  func.func @transform_1(%arg0: i32) -> (i32, i32, i32) {
    %c0_i32 = arith.constant 0 : i32
    %c0_i32_0 = arith.constant 0 : i32
    %c0_i32_1 = arith.constant 0 : i32
    return %arg0, %c0_i32, %c0_i32_0 : i32, i32, i32
  }
  func.func @transform_2(%arg0: i32) -> (i32, i32, i32) {
    %c0_i32 = arith.constant 0 : i32
    %c0_i32_0 = arith.constant 0 : i32
    %c0_i32_1 = arith.constant 0 : i32
    return %arg0, %c0_i32, %c0_i32_0 : i32, i32, i32
  }
  func.func @transform_3(%arg0: i32) -> (i32, i32, i32) {
    %c0_i32 = arith.constant 0 : i32
    %c0_i32_0 = arith.constant 0 : i32
    %c0_i32_1 = arith.constant 0 : i32
    return %arg0, %c0_i32, %c0_i32_0 : i32, i32, i32
  }
  func.func @transform_4(%arg0: i32) -> (i32, i32) {
    %c0_i32 = arith.constant 0 : i32
    %c0_i32_0 = arith.constant 0 : i32
    %c0_i32_1 = arith.constant 0 : i32
    return %c0_i32, %c0_i32_0 : i32, i32
  }
  func.func @transform_5(%arg0: i32) -> (i32, i32, i32) {
    %c0_i32 = arith.constant 0 : i32
    %c0_i32_0 = arith.constant 0 : i32
    %c0_i32_1 = arith.constant 0 : i32
    return %arg0, %c0_i32, %c0_i32_0 : i32, i32, i32
  }
}

</mosaic_0001>

<llo_original>
// kernel: tpu_custom_call.1
$region0: #{tpu_custom_call.1}
  #allocation0 [shape = 'u32[]', space=smem, size = 0x4, offset = 0x4, fixed_abs, tag = 'smem constant byte address 0x4 - core index']
  #allocation1 [shape = 'u32[144,128]{1,0:T(1,128)}', space=vmem, size = 0x12000, scoped, tag = 'internal scratch']
  %s0 = inlined_call_operand.vmem [shape: f32[8,128], index: 0, kind: input, shape index: {}]
  %s1 = inlined_call_operand.vmem [shape: s32[1,8,1], index: 1, kind: input, shape index: {}]
  %s2 = inlined_call_operand.vmem [shape: s32[1,8,1], index: 2, kind: input, shape index: {}]
  %s3 = inlined_call_operand.vmem [shape: s32[1,8,1], index: 3, kind: input, shape index: {}]
  %s4 = inlined_call_operand.vmem [shape: f32[1,128], index: 4, kind: input, shape index: {}]
  %s5 = inlined_call_operand.hbm [shape: f32[1,1,128], index: 5, kind: output, shape index: {}]
  %s6 = sld [smem:[#allocation0]]
  $region30: #{tpu_custom_call.1} parent=0
    _
  %s8 = ssub.s32 1, %s6
  %s9 = scalar_select 0, %s8, %s6
  $region1: #{tpu_custom_call.1} parent=0
    #allocation2 [shape = 'u8[512]{0}', space=vmem, size = 0x400, scoped, tag = 'output window, operand 0, single buffered']
    #allocation3 [shape = 's32[1]{0}', space=sflag, size = 0x4, scoped, tag = 'scoped memory for tpu_custom_call.1']
    %10 = vsyncpa [#allocation3], 0
    // Predicated region
    $region2: #{tpu_custom_call.1} parent=1 // pred_check
      _
    $region3: #{tpu_custom_call.1} parent=1 // pred_check_branch
      %12 = sbr.rel (0) target = $region5
    $region4: #{tpu_custom_call.1} parent=1 // pred_region
      _
    $region5: #{tpu_custom_call.1} parent=1 // pred_fallthru
      _
    // Predicated region
    $region6: #{tpu_custom_call.1} parent=1 // pred_check
      _
    $region7: #{tpu_custom_call.1} parent=1 // pred_check_branch
      %14 = sbr.rel (0) target = $region9
    $region8: #{tpu_custom_call.1} parent=1 // pred_region
      _
    $region9: #{tpu_custom_call.1} parent=1 // pred_fallthru
      _
    // Predicated region
    $region10: #{tpu_custom_call.1} parent=1 // pred_check
      _
    $region11: #{tpu_custom_call.1} parent=1 // pred_check_branch
      %16 = sbr.rel (0) target = $region13
    $region12: #{tpu_custom_call.1} parent=1 // pred_region
      _
    $region13: #{tpu_custom_call.1} parent=1 // pred_fallthru
      _
    // Predicated region
    $region14: #{tpu_custom_call.1} parent=1 // pred_check
      _
    $region15: #{tpu_custom_call.1} parent=1 // pred_check_branch
      %18 = sbr.rel (0) target = $region17
    $region16: #{tpu_custom_call.1} parent=1 // pred_region
      _
    $region17: #{tpu_custom_call.1} parent=1 // pred_fallthru
      _
    // Predicated region
    $region18: #{tpu_custom_call.1} parent=1 // pred_check
      _
    $region19: #{tpu_custom_call.1} parent=1 // pred_check_branch
      %20 = sbr.rel (0) target = $region21
    $region20: #{tpu_custom_call.1} parent=1 // pred_region
      _
    $region21: #{tpu_custom_call.1} parent=1 // pred_fallthru
      _
    %s21 = smul.u32 0, 8
    %v22 = vld [vmem:[%s0] sm:$0xff]
    %s23 = scalar_lea.vmem %s0, %s21
    %v24 = vld [vmem:[%s23] sm:$0xff]
    %v25 = vld [vmem:[%s1] sm:$0xff]
    %v26 = vld [vmem:[%s2] sm:$0xff]
    %v27 = vld [vmem:[%s3] sm:$0xff]
    %v28 = vlaneseq
    %v29 = vand.u32 %v28, 127
    %30 = vset.pattern.permute.xlu0 0
    %31 = vperm.xlu0 %30, %v25
    %v32 = vpop.permute.xlu0 %31
    %vm33 = vcmp.eq.s32.totalorder %v29, %v32
    %v34 = vsel %vm33, 1, 0
    %v35 = vcvt.s32.f32 %v34
    %36 = vset.pattern.permute.xlu0 0
    %37 = vperm.xlu0 %36, %v26
    %v38 = vpop.permute.xlu0 %37
    %vm39 = vcmp.eq.s32.totalorder %v29, %v38
    %v40 = vsel %vm39, 1, 0
    %v41 = vcvt.s32.f32 %v40
    %vm42 = vcmask 64512
    %v44 = vsel %vm42, %v35, 0
    %46 = vmatprep.subr.mxu0 0.0
    %47 = vmatpush1.msra.mxu0 %v22
    %48 = vmatprep.subr.mxu0 0.0
    %49 = vmatpush1.msra.mxu0 0.0
    %50 = vmatprep.subr.mxu0 0.0
    %51 = vmatpush1.msra.mxu0 0.0
    %52 = vmatprep.subr.mxu0 0.0
    %53 = vmatpush1.msra.mxu0 0.0
    %54 = vmatprep.subr.mxu0 0.0
    %55 = vmatpush1.msra.mxu0 0.0
    %56 = vmatprep.subr.mxu0 0.0
    %57 = vmatpush1.msra.mxu0 0.0
    %58 = vmatprep.subr.mxu0 0.0
    %59 = vmatpush1.msra.mxu0 0.0
    %60 = vmatprep.subr.mxu0 0.0
    %61 = vmatpush1.msra.mxu0 0.0
    %62 = vmatprep.subr.mxu0 0.0
    %63 = vmatpush1.msra.mxu0 0.0
    %64 = vmatprep.subr.mxu0 0.0
    %65 = vmatpush1.msra.mxu0 0.0
    %66 = vmatprep.subr.mxu0 0.0
    %67 = vmatpush1.msra.mxu0 0.0
    %68 = vmatprep.subr.mxu0 0.0
    %69 = vmatpush1.msra.mxu0 0.0
    %70 = vmatprep.subr.mxu0 0.0
    %71 = vmatpush1.msra.mxu0 0.0
    %72 = vmatprep.subr.mxu0 0.0
    %73 = vmatpush1.msra.mxu0 0.0
    %74 = vmatprep.subr.mxu0 0.0
    %75 = vmatpush1.msra.mxu0 0.0
    %76 = vmatprep.subr.mxu0 0.0
    %77 = vmatpush1.msra.mxu0 0.0
    %78 = vmatprep.subr.mxu0 0.0
    %79 = vmatpush1.msra.mxu0 0.0
    %80 = vmatprep.subr.mxu0 0.0
    %81 = vmatpush1.msra.mxu0 0.0
    %82 = vmatprep.subr.mxu0 0.0
    %83 = vmatpush1.msra.mxu0 0.0
    %84 = vmatprep.subr.mxu0 0.0
    %85 = vmatpush1.msra.mxu0 0.0
    %86 = vmatprep.subr.mxu0 0.0
    %87 = vmatpush1.msra.mxu0 0.0
    %88 = vmatprep.subr.mxu0 0.0
    %89 = vmatpush1.msra.mxu0 0.0
    %90 = vmatprep.subr.mxu0 0.0
    %91 = vmatpush1.msra.mxu0 0.0
    %92 = vmatprep.subr.mxu0 0.0
    %93 = vmatpush1.msra.mxu0 0.0
    %94 = vmatprep.subr.mxu0 0.0
    %95 = vmatpush1.msra.mxu0 0.0
    %96 = vmatprep.subr.mxu0 0.0
    %97 = vmatpush1.msra.mxu0 0.0
    %98 = vmatprep.subr.mxu0 0.0
    %99 = vmatpush1.msra.mxu0 0.0
    %100 = vmatprep.subr.mxu0 0.0
    %101 = vmatpush1.msra.mxu0 0.0
    %102 = vmatprep.subr.mxu0 0.0
    %103 = vmatpush1.msra.mxu0 0.0
    %104 = vmatprep.subr.mxu0 0.0
    %105 = vmatpush1.msra.mxu0 0.0
    %106 = vmatprep.subr.mxu0 0.0
    %107 = vmatpush1.msra.mxu0 0.0
    %108 = vmatprep.subr.mxu0 0.0
    %109 = vmatpush1.msra.mxu0 0.0
    %110 = vmatprep.mubr.f32.mxu0 0.0
    %111 = vmatmul.mubr.f32.gmra.mrb[0].mxu0 %v44
    %v112 = vpop.f32.mrb[0].mxu0
    %v113 = vadd.f32 0.0, %v112
    %v114 = vpop.f32.mrb[0].mxu0
    %115 = vdwg.mxu0
    %v117 = vsel %vm42, %v41, 0
    %119 = vmatprep.subr.mxu0 0.0
    %120 = vmatpush1.msra.mxu0 %v22
    %121 = vmatprep.subr.mxu0 0.0
    %122 = vmatpush1.msra.mxu0 0.0
    %123 = vmatprep.subr.mxu0 0.0
    %124 = vmatpush1.msra.mxu0 0.0
    %125 = vmatprep.subr.mxu0 0.0
    %126 = vmatpush1.msra.mxu0 0.0
    %127 = vmatprep.subr.mxu0 0.0
    %128 = vmatpush1.msra.mxu0 0.0
    %129 = vmatprep.subr.mxu0 0.0
    %130 = vmatpush1.msra.mxu0 0.0
    %131 = vmatprep.subr.mxu0 0.0
    %132 = vmatpush1.msra.mxu0 0.0
    %133 = vmatprep.subr.mxu0 0.0
    %134 = vmatpush1.msra.mxu0 0.0
    %135 = vmatprep.subr.mxu0 0.0
    %136 = vmatpush1.msra.mxu0 0.0
    %137 = vmatprep.subr.mxu0 0.0
    %138 = vmatpush1.msra.mxu0 0.0
    %139 = vmatprep.subr.mxu0 0.0
    %140 = vmatpush1.msra.mxu0 0.0
    %141 = vmatprep.subr.mxu0 0.0
    %142 = vmatpush1.msra.mxu0 0.0
    %143 = vmatprep.subr.mxu0 0.0
    %144 = vmatpush1.msra.mxu0 0.0
    %145 = vmatprep.subr.mxu0 0.0
    %146 = vmatpush1.msra.mxu0 0.0
    %147 = vmatprep.subr.mxu0 0.0
    %148 = vmatpush1.msra.mxu0 0.0
    %149 = vmatprep.subr.mxu0 0.0
    %150 = vmatpush1.msra.mxu0 0.0
    %151 = vmatprep.subr.mxu0 0.0
    %152 = vmatpush1.msra.mxu0 0.0
    %153 = vmatprep.subr.mxu0 0.0
    %154 = vmatpush1.msra.mxu0 0.0
    %155 = vmatprep.subr.mxu0 0.0
    %156 = vmatpush1.msra.mxu0 0.0
    %157 = vmatprep.subr.mxu0 0.0
    %158 = vmatpush1.msra.mxu0 0.0
    %159 = vmatprep.subr.mxu0 0.0
    %160 = vmatpush1.msra.mxu0 0.0
    %161 = vmatprep.subr.mxu0 0.0
    %162 = vmatpush1.msra.mxu0 0.0
    %163 = vmatprep.subr.mxu0 0.0
    %164 = vmatpush1.msra.mxu0 0.0
    %165 = vmatprep.subr.mxu0 0.0
    %166 = vmatpush1.msra.mxu0 0.0
    %167 = vmatprep.subr.mxu0 0.0
    %168 = vmatpush1.msra.mxu0 0.0
    %169 = vmatprep.subr.mxu0 0.0
    %170 = vmatpush1.msra.mxu0 0.0
    %171 = vmatprep.subr.mxu0 0.0
    %172 = vmatpush1.msra.mxu0 0.0
    %173 = vmatprep.subr.mxu0 0.0
    %174 = vmatpush1.msra.mxu0 0.0
    %175 = vmatprep.subr.mxu0 0.0
    %176 = vmatpush1.msra.mxu0 0.0
    %177 = vmatprep.subr.mxu0 0.0
    %178 = vmatpush1.msra.mxu0 0.0
    %179 = vmatprep.subr.mxu0 0.0
    %180 = vmatpush1.msra.mxu0 0.0
    %181 = vmatprep.subr.mxu0 0.0
    %182 = vmatpush1.msra.mxu0 0.0
    %183 = vmatprep.mubr.f32.mxu0 0.0
    %184 = vmatmul.mubr.f32.gmra.mrb[0].mxu0 %v117
    %v185 = vpop.f32.mrb[0].mxu0
    %v186 = vadd.f32 0.0, %v185
    %v187 = vpop.f32.mrb[0].mxu0
    %188 = vdwg.mxu0
    %v189 = vsub.f32 %v24, %v113
    %v190 = vmul.f32 %v189, %v189
    %191 = vadd.xlane.f32.xlu0 %v190
    %v192 = vpop.xlane.xlu0 %191
    %v193 = vadd.f32 %v192, 1e-08
    %v194 = vrsqrt.pop %v193
    %v195 = vmul.f32 %v193, %v194
    %vm196 = vcmp.eq.f32.partialorder %v193, inf
    %v197 = vsel %vm196, %v193, %v195
    %vm198 = vcmp.eq.f32.partialorder %v193, 0.0
    %v199 = vand.u32 %v193, 2147483648
    %v200 = vsel %vm198, %v199, %v197
    %v201 = vsub.f32 %v24, %v186
    %v202 = vmul.f32 %v201, %v201
    %203 = vadd.xlane.f32.xlu0 %v202
    %v204 = vpop.xlane.xlu0 %203
    %v205 = vadd.f32 %v204, 1e-08
    %v206 = vrsqrt.pop %v205
    %v207 = vmul.f32 %v205, %v206
    %vm208 = vcmp.eq.f32.partialorder %v205, inf
    %v209 = vsel %vm208, %v205, %v207
    %vm210 = vcmp.eq.f32.partialorder %v205, 0.0
    %v211 = vand.u32 %v205, 2147483648
    %v212 = vsel %vm210, %v211, %v209
    %v213 = vld [vmem:[%s4] sm:$0x1]
    %214 = vset.pattern.permute.xlu0 0
    %215 = vperm.xlu0 %214, %v27
    %v216 = vpop.permute.xlu0 %215
    %vm217 = vcmp.eq.s32.totalorder %v29, %v216
    %v219 = vlaneseq
    %v220 = vshrl.u32 %v219, 7
    %v221 = vsub.s32 0, %v220
    %v222 = vrot.slane %v213, %v221
    %v224 = vsel %vm217, %v222, 0.0
    %225 = vadd.xlane.f32.xlu0 %v224
    %v226 = vpop.xlane.xlu0 %225
    %v227 = vsub.f32 %v200, %v226
    %v228 = vadd.f32 %v227, 0.2
    %v229 = vmax.f32 %v228, 0.0
    %v230 = vsub.f32 %v226, %v212
    %v231 = vadd.f32 %v230, 0.2
    %v232 = vmax.f32 %v231, 0.0
    %v233 = vadd.f32 %v229, %v232
    %vm234 = vcmp.gt.f32.partialorder %v229, 0.0
    %v235 = vsel %vm234, 1, 0
    %v236 = vcvt.s32.f32 %v235
    %vm237 = vcmp.gt.f32.partialorder %v232, 0.0
    %v238 = vsel %vm237, 1, 0
    %v239 = vcvt.s32.f32 %v238
    %v240 = vadd.f32 %v236, %v239
    %vm241 = vcmp.eq.s32.totalorder %v29, 0
    %vm242 = vcmp.eq.s32.totalorder %v29, 1
    %v243 = vsel %vm242, %v240, 0.0
    %v244 = vsel %vm241, %v233, %v243
    %v245 = vrot.slane %v244, 4
    %v246 = vadd.f32 %v244, %v245
    %v247 = vrot.slane %v246, 2
    %v248 = vadd.f32 %v246, %v247
    %v249 = vrot.slane %v248, 1
    %v250 = vadd.f32 %v248, %v249
    %251 = vst [vmem:[#allocation2] sm:$0x1] %v250
    // Predicated region
    $region22: #{tpu_custom_call.1} parent=1 // pred_check
      _
    $region23: #{tpu_custom_call.1} parent=1 // pred_check_branch
      %253 = sbr.rel (0) target = $region25
    $region24: #{tpu_custom_call.1} parent=1 // pred_region
      %s255 = ssub.s32 16, 16
      %256 = vsyncadd [#allocation3], %s255
      %s258 = sshll.u32 [#allocation2], 4
      %s259 = int_to_ptr.vmem [resolvable:$true] %s258
      %261 = dma.vmem_to_hbm [thread:$0]  %s259, 16, %s5, [#allocation3]
    $region25: #{tpu_custom_call.1} parent=1 // pred_fallthru
      _
    // Predicated region
    $region26: #{tpu_custom_call.1} parent=1 // pred_check
      _
    $region27: #{tpu_custom_call.1} parent=1 // pred_check_branch
      %263 = sbr.rel (0) target = $region29
    $region28: #{tpu_custom_call.1} parent=1 // pred_region
      %264 = dma.done [#allocation3], 16
    $region29: #{tpu_custom_call.1} parent=1 // pred_fallthru
      _
    %265 = vsyncpa [#allocation3], 1

</llo_original>
